<compile_context>
chip_gen: v5e
topology: v5e:2x2
jax: 0.10.0
libtpu: 0.0.40
codegen_flags: <defaults>
</compile_context>

<pallas_src>
import functools

import jax
import jax.numpy as jnp
import numpy as np
from jax.experimental import pallas as pl
from jax.experimental.pallas import tpu as pltpu

BN_EPS = 1e-5
LANE = 128
SUBLANE = 8
NEG_LARGE = -1e30  # finite (not -inf); exp(NEG_LARGE - m) underflows to exactly 0 in f32


def _round_up(x, m):
    return ((x + m - 1) // m) * m


def _make_kernel(n_hidden):
    """Fused (folded-BN Linear -> LeakyReLU)^n_hidden -> Linear -> Softmax."""

    def kernel(*refs):
        # refs: x, [w, b] * n_hidden, w_last, b_last, out
        x_ref = refs[0]
        out_ref = refs[-1]

        h = x_ref[...]  # bf16 (TB, F0)  -- F0 is the real (un-padded) input width
        idx = 1
        for _ in range(n_hidden):
            w = refs[idx][...]       # bf16 (F_in, F_out_pad), BN pre-folded
            b = refs[idx + 1][...]   # f32  (1, F_out_pad), padded cols are 0
            idx += 2
            # Linear on the MXU (bf16 in, f32 accumulate).
            acc = jnp.dot(h, w, preferred_element_type=jnp.float32) + b
            # LeakyReLU(negative_slope=0.5): one vmul + vmax.
            acc = jnp.maximum(acc, 0.5 * acc)
            h = acc.astype(jnp.bfloat16)

        w_last = refs[idx][...]      # bf16 (F_pad, C_pad), padded cols are 0
        b_last = refs[idx + 1][...]  # f32  (1, C_pad), padded cols are -1e30
        logits = jnp.dot(h, w_last, preferred_element_type=jnp.float32) + b_last

        # Softmax: padded lanes carry -1e30 logits -> exp underflows to exact 0,
        # so no in-kernel masking is needed.
        m = jnp.max(logits, axis=-1, keepdims=True)
        e = jnp.exp(logits - m)
        denom = jnp.sum(e, axis=-1, keepdims=True)
        out_ref[...] = (e * pl.reciprocal(denom, approx=True)).astype(out_ref.dtype)

    return kernel


def init_disco_params(key, n_inputs, architecture, num_classes):
    """Deterministic synthetic parameters (PyTorch-style uniform Linear init,
    randomized BN running stats so the BN path is non-trivial)."""
    n_units = [n_inputs] + list(architecture)
    params = []
    for i in range(len(n_units) - 1):
        n_in, n_out = n_units[i], n_units[i + 1]
        key, k1, k2, k3, k4, k5, k6 = jax.random.split(key, 7)
        running_mean = 0.1 * jax.random.normal(k1, (1, n_in), jnp.float32)
        running_var = jax.random.uniform(k2, (1, n_in), jnp.float32, 0.5, 1.5)
        gamma = jax.random.uniform(k3, (1, n_in), jnp.float32, 0.5, 1.5)
        beta = 0.1 * jax.random.normal(k4, (1, n_in), jnp.float32)
        bound = 1.0 / np.sqrt(n_in)
        w = jax.random.uniform(k5, (n_in, n_out), jnp.float32, -bound, bound)
        b = jax.random.uniform(k6, (1, n_out), jnp.float32, -bound, bound)
        params.extend([running_mean, running_var, gamma, beta, w, b])

    n_in = architecture[-1]
    key, k1, k2 = jax.random.split(key, 3)
    bound = 1.0 / np.sqrt(n_in)
    w_last = jax.random.uniform(k1, (n_in, num_classes), jnp.float32, -bound, bound)
    b_last = jax.random.uniform(k2, (1, num_classes), jnp.float32, -bound, bound)
    params.extend([w_last, b_last])
    return params


def prepare_kernel_params(params, n_inputs, architecture, num_classes):
    """Fold eval-mode BatchNorm into each Linear, pad hidden/class dims to 128
    lanes, pre-cast weights to bf16, and bake the softmax padding mask into the
    final bias (-1e30 in padded class columns)."""
    n_units = [n_inputs] + list(architecture)
    prepared = []
    idx = 0
    for i in range(len(n_units) - 1):
        mean, var, gamma, beta, w, b = params[idx:idx + 6]
        idx += 6
        scale = gamma * jax.lax.rsqrt(var + BN_EPS)          # (1, n_in)
        w_f = w * scale.reshape(-1, 1)                        # (n_in, n_out)
        b_f = b + (beta - mean * scale) @ w                   # (1, n_out)
        # First layer keeps its real input width (the activation feeding it is
        # un-padded); later layers consume 128-lane-padded activations.
        in_p = n_units[i] if i == 0 else _round_up(n_units[i], LANE)
        out_p = _round_up(n_units[i + 1], LANE)
        w_pad = jnp.zeros((in_p, out_p), jnp.float32).at[:w_f.shape[0], :w_f.shape[1]].set(w_f)
        b_pad = jnp.zeros((1, out_p), jnp.float32).at[:, :b_f.shape[1]].set(b_f)
        prepared.append(w_pad.astype(jnp.bfloat16))
        prepared.append(b_pad)

    w_last, b_last = params[idx], params[idx + 1]
    in_p = _round_up(architecture[-1], LANE)
    out_p = _round_up(num_classes, LANE)
    w_pad = jnp.zeros((in_p, out_p), jnp.float32).at[:w_last.shape[0], :w_last.shape[1]].set(w_last)
    # Padded class columns get a large finite negative bias so the in-kernel
    # softmax needs no masking: exp(-1e30 - m) == 0 exactly in f32.
    b_pad = jnp.full((1, out_p), NEG_LARGE, jnp.float32).at[:, :b_last.shape[1]].set(b_last)
    prepared.append(w_pad.astype(jnp.bfloat16))
    prepared.append(b_pad)
    return prepared


@functools.partial(
    jax.jit, static_argnames=("n_hidden", "n_inputs", "num_classes", "block_batch"))
def disco_forward(x, prepared_params, n_hidden, n_inputs, num_classes, block_batch=512):
    """x: (B, ...) -> flatten(start_dim=1) -> softmax probs (B, num_classes)."""
    batch = x.shape[0]
    # Single cast straight to bf16 (no f32 hop), features stay un-padded.
    x_flat = x.reshape(batch, -1).astype(jnp.bfloat16)
    f0 = x_flat.shape[1]
    assert f0 == n_inputs == prepared_params[0].shape[0]

    c_pad = prepared_params[-1].shape[1]

    # Batch tile: as large as block_batch allows, but split so the grid has at
    # least 2 steps whenever the batch permits — keeps both TensorCores busy on
    # v7x while costing only one extra ~0.35us step on single-TC v5e/v6e.
    b_r = _round_up(batch, SUBLANE)
    half = _round_up(b_r // 2, SUBLANE) if b_r >= 2 * SUBLANE else b_r
    tb = max(SUBLANE, min(block_batch, half))
    b_pad = _round_up(b_r, tb)
    grid = (b_pad // tb,)

    if b_pad != batch:
        x_flat = jnp.pad(x_flat, ((0, b_pad - batch), (0, 0)))

    in_specs = [pl.BlockSpec((tb, f0), lambda i: (i, 0))]
    for p in prepared_params:
        # Constant index_map -> weights/biases stay resident across grid steps.
        in_specs.append(pl.BlockSpec(p.shape, lambda i: (0, 0)))
    out_spec = pl.BlockSpec((tb, c_pad), lambda i: (i, 0))
    out_shape = jax.ShapeDtypeStruct((b_pad, c_pad), jnp.bfloat16)

    # Advisory cost estimate for XLA's scheduler (tiny-kernel regime).
    flops = 2 * b_pad * sum(int(np.prod(p.shape)) for p in prepared_params[0::2])
    bytes_accessed = (int(x_flat.size) * 2
                      + sum(int(p.size) * p.dtype.itemsize for p in prepared_params)
                      + b_pad * c_pad * 2)
    cost = pl.CostEstimate(flops=flops, transcendentals=b_pad * c_pad,
                           bytes_accessed=bytes_accessed)

    out = pl.pallas_call(
        _make_kernel(n_hidden),
        out_shape=out_shape,
        grid=grid,
        in_specs=in_specs,
        out_specs=out_spec,
        compiler_params=pltpu.CompilerParams(
            dimension_semantics=("parallel",),
            vmem_limit_bytes=32 * 1024 * 1024,
        ),
        cost_estimate=cost,
    )(x_flat, *prepared_params)

    return out[:batch, :num_classes].astype(jnp.float32)


def disco_forward_ref(x, params, n_hidden):
    """Pure-JAX f32 reference (unfused BN) for correctness checking."""
    h = x.reshape(x.shape[0], -1).astype(jnp.float32)
    idx = 0
    for _ in range(n_hidden):
        mean, var, gamma, beta, w, b = params[idx:idx + 6]
        idx += 6
        h = (h - mean) * jax.lax.rsqrt(var + BN_EPS) * gamma + beta
        h = h @ w + b
        h = jnp.where(h > 0, h, 0.5 * h)
    w_last, b_last = params[idx], params[idx + 1]
    logits = h @ w_last + b_last
    return jax.nn.softmax(logits, axis=1)


if __name__ == "__main__":
    # Model config (mirrors DiscoNetwork(n_inputs=16, architecture=[32, 16], num_classes=2))
    n_inputs = 16
    architecture = [32, 16]
    num_classes = 2
    n_hidden = len(architecture)

    batch = 256  # -> tb=128, grid=(2,): both TensorCores used on v7x
    key = jax.random.PRNGKey(0)
    k_x, k_p = jax.random.split(key)

    # Input like (B, 4, 4); forward flattens to (B, 16).
    x = jax.random.normal(k_x, (batch, 4, 4), jnp.float32)
    params = init_disco_params(k_p, n_inputs, architecture, num_classes)
    prepared = prepare_kernel_params(params, n_inputs, architecture, num_classes)

    out = disco_forward(x, prepared, n_hidden=n_hidden, n_inputs=n_inputs,
                        num_classes=num_classes)
    out = jax.block_until_ready(out)

    # Compare against the f32 reference; tolerances cover bf16 matmul operands,
    # the bf16 output store, and the approximate reciprocal in the softmax.
    ref = disco_forward_ref(x, params, n_hidden)
    np.testing.assert_allclose(np.asarray(out), np.asarray(ref), rtol=2e-2, atol=2e-2)
    # Softmax rows should sum to ~1 (approx reciprocal + bf16 output rounding).
    np.testing.assert_allclose(np.asarray(out).sum(axis=1), np.ones(batch),
                               rtol=2e-2, atol=2e-2)

    print("KERNEL_OK")
</pallas_src>

<mosaic_0001>
module attributes {stable_mosaic.version = 11 : i64} {
  func.func @kernel(%arg0: i32, %arg1: memref<128x16xbf16, #tpu.memory_space<vmem>>, %arg2: memref<16x128xbf16, #tpu.memory_space<vmem>>, %arg3: memref<1x128xf32, #tpu.memory_space<vmem>>, %arg4: memref<128x128xbf16, #tpu.memory_space<vmem>>, %arg5: memref<1x128xf32, #tpu.memory_space<vmem>>, %arg6: memref<128x128xbf16, #tpu.memory_space<vmem>>, %arg7: memref<1x128xf32, #tpu.memory_space<vmem>>, %arg8: memref<128x128xbf16, #tpu.memory_space<vmem>>) attributes {dimension_semantics = [#tpu.dimension_semantics<parallel>], iteration_bounds = array<i64: 2>, scalar_prefetch = 0 : i64, scratch_operands = 0 : i64, tpu.core_type = #tpu.core_type<tc>, window_params = [{transform_indices = @transform_0, window_bounds = array<i64: 128, 16>}, {pipeline_mode = #tpu.pipeline_mode<synchronous>, transform_indices = @transform_1, window_bounds = array<i64: 16, 128>}, {pipeline_mode = #tpu.pipeline_mode<synchronous>, transform_indices = @transform_2, window_bounds = array<i64: 1, 128>}, {pipeline_mode = #tpu.pipeline_mode<synchronous>, transform_indices = @transform_3, window_bounds = array<i64: 128, 128>}, {pipeline_mode = #tpu.pipeline_mode<synchronous>, transform_indices = @transform_4, window_bounds = array<i64: 1, 128>}, {pipeline_mode = #tpu.pipeline_mode<synchronous>, transform_indices = @transform_5, window_bounds = array<i64: 128, 128>}, {pipeline_mode = #tpu.pipeline_mode<synchronous>, transform_indices = @transform_6, window_bounds = array<i64: 1, 128>}, {transform_indices = @transform_7, window_bounds = array<i64: 128, 128>}]} {
    %c0 = arith.constant 0 : index
    %c0_0 = arith.constant 0 : index
    %0 = vector.load %arg1[%c0, %c0_0] : memref<128x16xbf16, #tpu.memory_space<vmem>>, vector<128x16xbf16>
    %c0_1 = arith.constant 0 : index
    %c0_2 = arith.constant 0 : index
    %1 = vector.load %arg2[%c0_1, %c0_2] : memref<16x128xbf16, #tpu.memory_space<vmem>>, vector<16x128xbf16>
    %c0_3 = arith.constant 0 : index
    %c0_4 = arith.constant 0 : index
    %2 = vector.load %arg3[%c0_3, %c0_4] : memref<1x128xf32, #tpu.memory_space<vmem>>, vector<1x128xf32>
    %cst = arith.constant dense<0.000000e+00> : vector<128x128xf32>
    %3 = tpu.matmul %0, %1, %cst {dimension_numbers = #tpu.dot_dimension_numbers<[1], [0], [0], [1], [0, 0, 1, 1], [], []>} : vector<128x16xbf16>, vector<16x128xbf16>, vector<128x128xf32> -> vector<128x128xf32>
    %4 = vector.broadcast %2 : vector<1x128xf32> to vector<128x128xf32>
    %5 = arith.addf %3, %4 : vector<128x128xf32>
    %cst_5 = arith.constant 5.000000e-01 : f32
    %6 = vector.broadcast %cst_5 : f32 to vector<128x128xf32>
    %7 = arith.mulf %6, %5 : vector<128x128xf32>
    %8 = arith.maximumf %5, %7 : vector<128x128xf32>
    %9 = arith.truncf %8 : vector<128x128xf32> to vector<128x128xbf16>
    %c0_6 = arith.constant 0 : index
    %c0_7 = arith.constant 0 : index
    %10 = vector.load %arg4[%c0_6, %c0_7] : memref<128x128xbf16, #tpu.memory_space<vmem>>, vector<128x128xbf16>
    %c0_8 = arith.constant 0 : index
    %c0_9 = arith.constant 0 : index
    %11 = vector.load %arg5[%c0_8, %c0_9] : memref<1x128xf32, #tpu.memory_space<vmem>>, vector<1x128xf32>
    %cst_10 = arith.constant dense<0.000000e+00> : vector<128x128xf32>
    %12 = tpu.matmul %9, %10, %cst_10 {dimension_numbers = #tpu.dot_dimension_numbers<[1], [0], [0], [1], [0, 0, 1, 1], [], []>} : vector<128x128xbf16>, vector<128x128xbf16>, vector<128x128xf32> -> vector<128x128xf32>
    %13 = vector.broadcast %11 : vector<1x128xf32> to vector<128x128xf32>
    %14 = arith.addf %12, %13 : vector<128x128xf32>
    %cst_11 = arith.constant 5.000000e-01 : f32
    %15 = vector.broadcast %cst_11 : f32 to vector<128x128xf32>
    %16 = arith.mulf %15, %14 : vector<128x128xf32>
    %17 = arith.maximumf %14, %16 : vector<128x128xf32>
    %18 = arith.truncf %17 : vector<128x128xf32> to vector<128x128xbf16>
    %c0_12 = arith.constant 0 : index
    %c0_13 = arith.constant 0 : index
    %19 = vector.load %arg6[%c0_12, %c0_13] : memref<128x128xbf16, #tpu.memory_space<vmem>>, vector<128x128xbf16>
    %c0_14 = arith.constant 0 : index
    %c0_15 = arith.constant 0 : index
    %20 = vector.load %arg7[%c0_14, %c0_15] : memref<1x128xf32, #tpu.memory_space<vmem>>, vector<1x128xf32>
    %cst_16 = arith.constant dense<0.000000e+00> : vector<128x128xf32>
    %21 = tpu.matmul %18, %19, %cst_16 {dimension_numbers = #tpu.dot_dimension_numbers<[1], [0], [0], [1], [0, 0, 1, 1], [], []>} : vector<128x128xbf16>, vector<128x128xbf16>, vector<128x128xf32> -> vector<128x128xf32>
    %22 = vector.broadcast %20 : vector<1x128xf32> to vector<128x128xf32>
    %23 = arith.addf %21, %22 : vector<128x128xf32>
    %cst_17 = arith.constant dense<0xFF800000> : vector<128xf32>
    %24 = vector.multi_reduction <maximumf>, %23, %cst_17 [1] : vector<128x128xf32> to vector<128xf32>
    %25 = vector.shape_cast %24 : vector<128xf32> to vector<128x1xf32>
    %26 = vector.broadcast %25 : vector<128x1xf32> to vector<128x128xf32>
    %27 = arith.subf %23, %26 : vector<128x128xf32>
    %28 = math.exp %27 : vector<128x128xf32>
    %cst_18 = arith.constant dense<0.000000e+00> : vector<128xf32>
    %29 = vector.multi_reduction <add>, %28, %cst_18 [1] : vector<128x128xf32> to vector<128xf32>
    %30 = vector.shape_cast %29 : vector<128xf32> to vector<128x1xf32>
    %31 = tpu.reciprocal %30 {approx = true} : vector<128x1xf32> -> vector<128x1xf32>
    %32 = vector.broadcast %31 : vector<128x1xf32> to vector<128x128xf32>
    %33 = arith.mulf %28, %32 : vector<128x128xf32>
    %34 = arith.truncf %33 : vector<128x128xf32> to vector<128x128xbf16>
    %c0_19 = arith.constant 0 : index
    %c0_20 = arith.constant 0 : index
    %35 = vector.load %arg8[%c0_19, %c0_20] : memref<128x128xbf16, #tpu.memory_space<vmem>>, vector<128x128xbf16>
    tpu.vector_store %arg8[%c0_19, %c0_20], %34 {strides = array<i32>} : memref<128x128xbf16, #tpu.memory_space<vmem>>, vector<128x128xbf16>,
    return
  }
  func.func @transform_0(%arg0: i32) -> (i32, i32) {
    %c0_i32 = arith.constant 0 : i32
    %c0_i32_0 = arith.constant 0 : i32
    return %arg0, %c0_i32 : i32, i32
  }
  func.func @transform_1(%arg0: i32) -> (i32, i32) {
    %c0_i32 = arith.constant 0 : i32
    %c0_i32_0 = arith.constant 0 : i32
    %c0_i32_1 = arith.constant 0 : i32
    return %c0_i32, %c0_i32_0 : i32, i32
  }
  func.func @transform_2(%arg0: i32) -> (i32, i32) {
    %c0_i32 = arith.constant 0 : i32
    %c0_i32_0 = arith.constant 0 : i32
    %c0_i32_1 = arith.constant 0 : i32
    return %c0_i32, %c0_i32_0 : i32, i32
  }
  func.func @transform_3(%arg0: i32) -> (i32, i32) {
    %c0_i32 = arith.constant 0 : i32
    %c0_i32_0 = arith.constant 0 : i32
    %c0_i32_1 = arith.constant 0 : i32
    return %c0_i32, %c0_i32_0 : i32, i32
  }
  func.func @transform_4(%arg0: i32) -> (i32, i32) {
    %c0_i32 = arith.constant 0 : i32
    %c0_i32_0 = arith.constant 0 : i32
    %c0_i32_1 = arith.constant 0 : i32
    return %c0_i32, %c0_i32_0 : i32, i32
  }
  func.func @transform_5(%arg0: i32) -> (i32, i32) {
    %c0_i32 = arith.constant 0 : i32
    %c0_i32_0 = arith.constant 0 : i32
    %c0_i32_1 = arith.constant 0 : i32
    return %c0_i32, %c0_i32_0 : i32, i32
  }
  func.func @transform_6(%arg0: i32) -> (i32, i32) {
    %c0_i32 = arith.constant 0 : i32
    %c0_i32_0 = arith.constant 0 : i32
    %c0_i32_1 = arith.constant 0 : i32
    return %c0_i32, %c0_i32_0 : i32, i32
  }
  func.func @transform_7(%arg0: i32) -> (i32, i32) {
    %c0_i32 = arith.constant 0 : i32
    %c0_i32_0 = arith.constant 0 : i32
    return %arg0, %c0_i32 : i32, i32
  }
}

</mosaic_0001>

<llo_original>
// kernel: disco_forward.1
$region0: #{disco_forward.1}
  #allocation0 [shape = 'u32[]', space=smem, size = 0x4, offset = 0x4, fixed_abs, tag = 'smem constant byte address 0x4 - core index']
  #allocation1 [shape = 'u32[72,128]{1,0:T(1,128)}', space=vmem, size = 0x9000, scoped, tag = 'internal scratch']
  %s0 = inlined_call_operand.vmem [shape: bf16[256,16], index: 0, kind: input, shape index: {}]
  %s1 = inlined_call_operand.vmem [shape: bf16[16,128], index: 1, kind: input, shape index: {}]
  %s2 = inlined_call_operand.vmem [shape: f32[1,128], index: 2, kind: input, shape index: {}]
  %s3 = inlined_call_operand.vmem [shape: bf16[128,128], index: 3, kind: input, shape index: {}]
  %s4 = inlined_call_operand.vmem [shape: f32[1,128], index: 4, kind: input, shape index: {}]
  %s5 = inlined_call_operand.vmem [shape: bf16[128,128], index: 5, kind: input, shape index: {}]
  %s6 = inlined_call_operand.vmem [shape: f32[1,128], index: 6, kind: input, shape index: {}]
  %s7 = inlined_call_operand.vmem [shape: bf16[256,128], index: 7, kind: output, shape index: {}]
  %s8 = sld [smem:[#allocation0]]
  $region61: #{disco_forward.1} parent=0
    _
  %s10 = ssub.s32 1, %s8
  %s11 = scalar_select 0, %s10, %s8
  loop: start=0, step=1, limit=4
  $region2: #{disco_forward.1} parent=0 // loop_pre_header
    _
  $region3: #{disco_forward.1} parent=0 // loop_header
    %s13 = sphi 0, %s17
    %p14 = scmp.ge.s32.totalorder %s13, 4
    %s23 = sphi 0, %s25
    %s26 = sphi 0, %s23
    %s27 = sphi 0, %s26
    %s43 = sphi 0, %s27
    %s47 = sphi 0, %s47
    %s49 = sphi 0, %s47
    %s50 = sphi 0, %s49
    %s64 = sphi 0, %s50
    %s68 = sphi 0, %s68
    %s70 = sphi 0, %s68
    %s71 = sphi 0, %s70
    %s85 = sphi 0, %s71
    %s89 = sphi 0, %s89
    %s91 = sphi 0, %s89
    %s92 = sphi 0, %s91
    %s106 = sphi 0, %s92
    %s110 = sphi 0, %s110
    %s112 = sphi 0, %s110
    %s113 = sphi 0, %s112
    %s127 = sphi 0, %s113
    %s131 = sphi 0, %s131
    %s133 = sphi 0, %s131
    %s134 = sphi 0, %s133
    %s148 = sphi 0, %s134
    %s152 = sphi 0, %s152
    %s154 = sphi 0, %s152
    %s155 = sphi 0, %s154
    %s169 = sphi 0, %s155
    %s175 = sphi 0, %s177
    %s178 = sphi 0, %s175
    %s179 = sphi 0, %s178
    %s195 = sphi 0, %s179
  $region4: #{disco_forward.1} parent=0 // loop_header_branch
    %16 = sbr.rel (%p14) target = $region8
  $region5: #{disco_forward.1} parent=0 // loop_body
    %s18 = ssub.s32 %s13, 1
    %s19 = ssub.s32 %s13, 2
    %s20 = sadd.s32 %s13, 1
    %s21 = ssub.s32 %s13, %s20
    %p22 = scmp.eq.s32.totalorder %s21, 0
    %s24 = sadd.s32 %s23, 1
    %s25 = scalar_select %p22, %s23, %s24
    %p28 = pneg %p22
    %p29 = scmp.eq.s32.totalorder %s13, 1
    %p30 = por %p28, %p29
    %p31 = scmp.ne.s32.totalorder %s23, %s26
    %p32 = scmp.eq.s32.totalorder %s13, 0
    %p33 = por %p31, %p32
    %p34 = scmp.ne.s32.totalorder %s23, %s26
    %p35 = scmp.eq.s32.totalorder %s18, 1
    %p36 = por %p34, %p35
    %p37 = scmp.ne.s32.totalorder %s26, %s27
    %p38 = scmp.eq.s32.totalorder %s18, 0
    %p39 = por %p37, %p38
    %p40 = scmp.ne.s32.totalorder %s26, %s27
    %p41 = scmp.eq.s32.totalorder %s19, 1
    %p42 = por %p40, %p41
    %p44 = scmp.ne.s32.totalorder %s27, %s43
    %p45 = scmp.eq.s32.totalorder %s19, 0
    %p46 = por %p44, %p45
    %s48 = sadd.s32 %s47, 1
    %p51 = scmp.eq.s32.totalorder %s13, 1
    %p52 = scmp.ne.s32.totalorder %s47, %s49
    %p53 = scmp.eq.s32.totalorder %s13, 0
    %p54 = por %p52, %p53
    %p55 = scmp.ne.s32.totalorder %s47, %s49
    %p56 = scmp.eq.s32.totalorder %s18, 1
    %p57 = por %p55, %p56
    %p58 = scmp.ne.s32.totalorder %s49, %s50
    %p59 = scmp.eq.s32.totalorder %s18, 0
    %p60 = por %p58, %p59
    %p61 = scmp.ne.s32.totalorder %s49, %s50
    %p62 = scmp.eq.s32.totalorder %s19, 1
    %p63 = por %p61, %p62
    %p65 = scmp.ne.s32.totalorder %s50, %s64
    %p66 = scmp.eq.s32.totalorder %s19, 0
    %p67 = por %p65, %p66
    %s69 = sadd.s32 %s68, 1
    %p72 = scmp.eq.s32.totalorder %s13, 1
    %p73 = scmp.ne.s32.totalorder %s68, %s70
    %p74 = scmp.eq.s32.totalorder %s13, 0
    %p75 = por %p73, %p74
    %p76 = scmp.ne.s32.totalorder %s68, %s70
    %p77 = scmp.eq.s32.totalorder %s18, 1
    %p78 = por %p76, %p77
    %p79 = scmp.ne.s32.totalorder %s70, %s71
    %p80 = scmp.eq.s32.totalorder %s18, 0
    %p81 = por %p79, %p80
    %p82 = scmp.ne.s32.totalorder %s70, %s71
    %p83 = scmp.eq.s32.totalorder %s19, 1
    %p84 = por %p82, %p83
    %p86 = scmp.ne.s32.totalorder %s71, %s85
    %p87 = scmp.eq.s32.totalorder %s19, 0
    %p88 = por %p86, %p87
    %s90 = sadd.s32 %s89, 1
    %p93 = scmp.eq.s32.totalorder %s13, 1
    %p94 = scmp.ne.s32.totalorder %s89, %s91
    %p95 = scmp.eq.s32.totalorder %s13, 0
    %p96 = por %p94, %p95
    %p97 = scmp.ne.s32.totalorder %s89, %s91
    %p98 = scmp.eq.s32.totalorder %s18, 1
    %p99 = por %p97, %p98
    %p100 = scmp.ne.s32.totalorder %s91, %s92
    %p101 = scmp.eq.s32.totalorder %s18, 0
    %p102 = por %p100, %p101
    %p103 = scmp.ne.s32.totalorder %s91, %s92
    %p104 = scmp.eq.s32.totalorder %s19, 1
    %p105 = por %p103, %p104
    %p107 = scmp.ne.s32.totalorder %s92, %s106
    %p108 = scmp.eq.s32.totalorder %s19, 0
    %p109 = por %p107, %p108
    %s111 = sadd.s32 %s110, 1
    %p114 = scmp.eq.s32.totalorder %s13, 1
    %p115 = scmp.ne.s32.totalorder %s110, %s112
    %p116 = scmp.eq.s32.totalorder %s13, 0
    %p117 = por %p115, %p116
    %p118 = scmp.ne.s32.totalorder %s110, %s112
    %p119 = scmp.eq.s32.totalorder %s18, 1
    %p120 = por %p118, %p119
    %p121 = scmp.ne.s32.totalorder %s112, %s113
    %p122 = scmp.eq.s32.totalorder %s18, 0
    %p123 = por %p121, %p122
    %p124 = scmp.ne.s32.totalorder %s112, %s113
    %p125 = scmp.eq.s32.totalorder %s19, 1
    %p126 = por %p124, %p125
    %p128 = scmp.ne.s32.totalorder %s113, %s127
    %p129 = scmp.eq.s32.totalorder %s19, 0
    %p130 = por %p128, %p129
    %s132 = sadd.s32 %s131, 1
    %p135 = scmp.eq.s32.totalorder %s13, 1
    %p136 = scmp.ne.s32.totalorder %s131, %s133
    %p137 = scmp.eq.s32.totalorder %s13, 0
    %p138 = por %p136, %p137
    %p139 = scmp.ne.s32.totalorder %s131, %s133
    %p140 = scmp.eq.s32.totalorder %s18, 1
    %p141 = por %p139, %p140
    %p142 = scmp.ne.s32.totalorder %s133, %s134
    %p143 = scmp.eq.s32.totalorder %s18, 0
    %p144 = por %p142, %p143
    %p145 = scmp.ne.s32.totalorder %s133, %s134
    %p146 = scmp.eq.s32.totalorder %s19, 1
    %p147 = por %p145, %p146
    %p149 = scmp.ne.s32.totalorder %s134, %s148
    %p150 = scmp.eq.s32.totalorder %s19, 0
    %p151 = por %p149, %p150
    %s153 = sadd.s32 %s152, 1
    %p156 = scmp.eq.s32.totalorder %s13, 1
    %p157 = scmp.ne.s32.totalorder %s152, %s154
    %p158 = scmp.eq.s32.totalorder %s13, 0
    %p159 = por %p157, %p158
    %p160 = scmp.ne.s32.totalorder %s152, %s154
    %p161 = scmp.eq.s32.totalorder %s18, 1
    %p162 = por %p160, %p161
    %p163 = scmp.ne.s32.totalorder %s154, %s155
    %p164 = scmp.eq.s32.totalorder %s18, 0
    %p165 = por %p163, %p164
    %p166 = scmp.ne.s32.totalorder %s154, %s155
    %p167 = scmp.eq.s32.totalorder %s19, 1
    %p168 = por %p166, %p167
    %p170 = scmp.ne.s32.totalorder %s155, %s169
    %p171 = scmp.eq.s32.totalorder %s19, 0
    %p172 = por %p170, %p171
    %s173 = ssub.s32 %s13, %s20
    %p174 = scmp.eq.s32.totalorder %s173, 0
    %s176 = sadd.s32 %s175, 1
    %s177 = scalar_select %p174, %s175, %s176
    %p180 = pneg %p174
    %p181 = scmp.eq.s32.totalorder %s13, 1
    %p182 = por %p180, %p181
    %p183 = scmp.ne.s32.totalorder %s175, %s178
    %p184 = scmp.eq.s32.totalorder %s13, 0
    %p185 = por %p183, %p184
    %p186 = scmp.ne.s32.totalorder %s175, %s178
    %p187 = scmp.eq.s32.totalorder %s18, 1
    %p188 = por %p186, %p187
    %p189 = scmp.ne.s32.totalorder %s178, %s179
    %p190 = scmp.eq.s32.totalorder %s18, 0
    %p191 = por %p189, %p190
    %p192 = scmp.ne.s32.totalorder %s178, %s179
    %p193 = scmp.eq.s32.totalorder %s19, 1
    %p194 = por %p192, %p193
    %p196 = scmp.ne.s32.totalorder %s179, %s195
    %p197 = scmp.eq.s32.totalorder %s19, 0
    %p198 = por %p196, %p197
    %p199 = scmp.le.s32.totalorder 1, %s13
    %p200 = scmp.lt.s32.totalorder %s13, 3
    %p201 = pnand %p199, %p200
    %p202 = pneg %p201
    // Predicated region
    $region9: #{disco_forward.1} parent=5 // pred_check
      _
    $region10: #{disco_forward.1} parent=5 // pred_check_branch
      %204 = sbr.rel (%p201) target = $region12
    $region11: #{disco_forward.1} parent=5 // pred_region
      %s205 = ssub.s32 %s13, 1
      // Predicated region
      $region13: #{disco_forward.1} parent=11 // pred_check
        %p206 = pneg %p60
      $region14: #{disco_forward.1} parent=11 // pred_check_branch
        %208 = sbr.rel (%p206) target = $region16
      $region15: #{disco_forward.1} parent=11 // pred_region
        _
      $region16: #{disco_forward.1} parent=11 // pred_fallthru
        _
      // Predicated region
      $region17: #{disco_forward.1} parent=11 // pred_check
        %p209 = pneg %p81
      $region18: #{disco_forward.1} parent=11 // pred_check_branch
        %211 = sbr.rel (%p209) target = $region20
      $region19: #{disco_forward.1} parent=11 // pred_region
        _
      $region20: #{disco_forward.1} parent=11 // pred_fallthru
        _
      // Predicated region
      $region21: #{disco_forward.1} parent=11 // pred_check
        %p212 = pneg %p102
      $region22: #{disco_forward.1} parent=11 // pred_check_branch
        %214 = sbr.rel (%p212) target = $region24
      $region23: #{disco_forward.1} parent=11 // pred_region
        _
      $region24: #{disco_forward.1} parent=11 // pred_fallthru
        _
      // Predicated region
      $region25: #{disco_forward.1} parent=11 // pred_check
        %p215 = pneg %p123
      $region26: #{disco_forward.1} parent=11 // pred_check_branch
        %217 = sbr.rel (%p215) target = $region28
      $region27: #{disco_forward.1} parent=11 // pred_region
        _
      $region28: #{disco_forward.1} parent=11 // pred_fallthru
        _
      // Predicated region
      $region29: #{disco_forward.1} parent=11 // pred_check
        %p218 = pneg %p144
      $region30: #{disco_forward.1} parent=11 // pred_check_branch
        %220 = sbr.rel (%p218) target = $region32
      $region31: #{disco_forward.1} parent=11 // pred_region
        _
      $region32: #{disco_forward.1} parent=11 // pred_fallthru
        _
      // Predicated region
      $region33: #{disco_forward.1} parent=11 // pred_check
        %p221 = pneg %p165
      $region34: #{disco_forward.1} parent=11 // pred_check_branch
        %223 = sbr.rel (%p221) target = $region36
      $region35: #{disco_forward.1} parent=11 // pred_region
        _
      $region36: #{disco_forward.1} parent=11 // pred_fallthru
        _
    $region12: #{disco_forward.1} parent=5 // pred_fallthru
      _
    %p224 = scmp.lt.s32.totalorder %s13, 2
    // Predicated region
    $region37: #{disco_forward.1} parent=5 // pred_check
      %p225 = pneg %p224
    $region38: #{disco_forward.1} parent=5 // pred_check_branch
      %227 = sbr.rel (%p225) target = $region40
    $region39: #{disco_forward.1} parent=5 // pred_region
      // Predicated region
      $region41: #{disco_forward.1} parent=39 // pred_check
        %p228 = pneg %p33
      $region42: #{disco_forward.1} parent=39 // pred_check_branch
        %230 = sbr.rel (%p228) target = $region44
      $region43: #{disco_forward.1} parent=39 // pred_region
        %s231 = smul.u32 16, %s13
        %p232 = scmp.lt.s32.totalorder %s231, 31
        %s233 = scalar_select %p232, %s231, 31
        %s234 = smul.addr %s233, 4
        %s235 = scalar_lea.vmem %s0, %s234
        %s236 = smul.u32 16, %s13
      $region44: #{disco_forward.1} parent=39 // pred_fallthru
        _
    $region40: #{disco_forward.1} parent=5 // pred_fallthru
      _
    %p237 = scmp.le.s32.totalorder 1, %s13
    %p238 = scmp.lt.s32.totalorder %s13, 3
    %p239 = pnand %p237, %p238
    %p240 = pneg %p239
    // Predicated region
    $region45: #{disco_forward.1} parent=5 // pred_check
      _
    $region46: #{disco_forward.1} parent=5 // pred_check_branch
      %242 = sbr.rel (%p239) target = $region48
    $region47: #{disco_forward.1} parent=5 // pred_region
      %s243 = ssub.s32 %s13, 1
      %s244 = smul.u32 16, %s18
      %p245 = scmp.lt.s32.totalorder %s244, 31
      %s246 = scalar_select %p245, %s244, 31
      %s247 = smul.addr %s246, 4
      %s248 = scalar_lea.vmem %s0, %s247
      %p249 = pneg %p39
      %p250 = pneg %p36
      %p251 = pneg %p60
      %p252 = pneg %p57
      %p253 = pneg %p81
      %p254 = pneg %p78
      %p255 = pneg %p102
      %p256 = pneg %p99
      %p257 = pneg %p123
      %p258 = pneg %p120
      %p259 = pneg %p144
      %p260 = pneg %p141
      %p261 = pneg %p165
      %p262 = pneg %p162
      %p263 = pneg %p191
      %p264 = pneg %p188
      %s265 = smul.u32 16, %s18
      %p266 = scmp.lt.s32.totalorder %s265, 31
      %s267 = scalar_select %p266, %s265, 31
      %s268 = smul.addr %s267, 4
      %s269 = scalar_lea.vmem %s7, %s268
      %s270 = smul.u32 16, %s18
      %p271 = scmp.lt.s32.totalorder %s270, 31
      %s272 = scalar_select %p271, %s270, 31
      %s273 = smul.addr %s272, 4
      %s274 = scalar_lea.vmem %s0, %s273
      %s275 = smul.u32 16, %s18
      %s276 = smul.u32 16, %s18
      %p277 = scmp.lt.s32.totalorder %s276, 31
      %s278 = scalar_select %p277, %s276, 31
      %s279 = smul.addr %s278, 4
      %s280 = scalar_lea.vmem %s7, %s279
      %s281 = smul.u32 16, %s18
      %v283 = vld [vmem:[%s274] sm:$0xf]
      %v284 = vld [vmem:[%s274 + $0x4] sm:$0xf]
      %v285 = vld [vmem:[%s274 + $0x8] sm:$0xf]
      %v286 = vld [vmem:[%s274 + $0xc] sm:$0xf]
      %v287 = vld [vmem:[%s274 + $0x10] sm:$0xf]
      %v288 = vld [vmem:[%s274 + $0x14] sm:$0xf]
      %v289 = vld [vmem:[%s274 + $0x18] sm:$0xf]
      %v290 = vld [vmem:[%s274 + $0x1c] sm:$0xf]
      %v291 = vld [vmem:[%s274 + $0x20] sm:$0xf]
      %v292 = vld [vmem:[%s274 + $0x24] sm:$0xf]
      %v293 = vld [vmem:[%s274 + $0x28] sm:$0xf]
      %v294 = vld [vmem:[%s274 + $0x2c] sm:$0xf]
      %v295 = vld [vmem:[%s274 + $0x30] sm:$0xf]
      %v296 = vld [vmem:[%s274 + $0x34] sm:$0xf]
      %v297 = vld [vmem:[%s274 + $0x38] sm:$0xf]
      %v298 = vld [vmem:[%s274 + $0x3c] sm:$0xf]
      %v299 = vld [vmem:[%s1] sm:$0xf]
      %v300 = vld [vmem:[%s1 + $0x4] sm:$0xf]
      %v301 = vld [vmem:[%s2] sm:$0x1]
      %v303 = vperm.slane %v301, 0
      %v321 = vunpack.c.l.b16 %v283
      %v322 = vunpack.c.l.b16 %v284
      %v323 = vunpack.c.l.b16 %v285
      %v324 = vunpack.c.l.b16 %v286
      %v325 = vunpack.c.l.b16 %v287
      %v326 = vunpack.c.l.b16 %v288
      %v327 = vunpack.c.l.b16 %v289
      %v328 = vunpack.c.l.b16 %v290
      %v329 = vunpack.c.l.b16 %v291
      %v330 = vunpack.c.l.b16 %v292
      %v331 = vunpack.c.l.b16 %v293
      %v332 = vunpack.c.l.b16 %v294
      %v333 = vunpack.c.l.b16 %v295
      %v334 = vunpack.c.l.b16 %v296
      %v335 = vunpack.c.l.b16 %v297
      %v336 = vunpack.c.l.b16 %v298
      %v337 = vpack.c.b16 %v322, %v321
      %v338 = vpack.c.b16 %v324, %v323
      %v339 = vpack.c.b16 %v326, %v325
      %v340 = vpack.c.b16 %v328, %v327
      %v341 = vpack.c.b16 %v330, %v329
      %v342 = vpack.c.b16 %v332, %v331
      %v343 = vpack.c.b16 %v334, %v333
      %v344 = vpack.c.b16 %v336, %v335
      %v347 = vunpack.c.l.b16 %v299
      %v348 = vunpack.c.l.b16 %v300
      %v349 = vpack.c.b16 %v348, %v347
      %vm351 = vcmask 130048
      %v353 = vsel %vm351, %v337, 0
      %v356 = vsel %vm351, %v338, 0
      %v359 = vsel %vm351, %v339, 0
      %v362 = vsel %vm351, %v340, 0
      %v365 = vsel %vm351, %v341, 0
      %v368 = vsel %vm351, %v342, 0
      %v371 = vsel %vm351, %v343, 0
      %v374 = vsel %vm351, %v344, 0
      %376 = vmatpush.bf16.msra.mxu0 0
      %377 = vmatpush.bf16.msra.mxu0 0
      %378 = vmatpush.bf16.msra.mxu0 0
      %379 = vmatpush.bf16.msra.mxu0 0
      %380 = vmatpush.bf16.msra.mxu0 0
      %381 = vmatpush.bf16.msra.mxu0 0
      %382 = vmatpush.bf16.msra.mxu0 0
      %383 = vmatpush.bf16.msra.mxu0 %v349
      %384 = vmatmul.bf16.gmra.mxu0 %v353
      %v385 = vpop.f32.mrf.mxu0
      %v386 = vadd.f32 %v303, %v385
      %v387 = vpop.f32.mrf.mxu0
      %v388 = vadd.f32 %v303, %v387
      %389 = vmatmul.bf16.gmra.mxu0 %v356
      %v390 = vpop.f32.mrf.mxu0
      %v391 = vadd.f32 %v303, %v390
      %v392 = vpop.f32.mrf.mxu0
      %v393 = vadd.f32 %v303, %v392
      %394 = vmatmul.bf16.gmra.mxu0 %v359
      %v395 = vpop.f32.mrf.mxu0
      %v396 = vadd.f32 %v303, %v395
      %v397 = vpop.f32.mrf.mxu0
      %v398 = vadd.f32 %v303, %v397
      %399 = vmatmul.bf16.gmra.mxu0 %v362
      %v400 = vpop.f32.mrf.mxu0
      %v401 = vadd.f32 %v303, %v400
      %v402 = vpop.f32.mrf.mxu0
      %v403 = vadd.f32 %v303, %v402
      %404 = vmatmul.bf16.gmra.mxu0 %v365
      %v405 = vpop.f32.mrf.mxu0
      %v406 = vadd.f32 %v303, %v405
      %v407 = vpop.f32.mrf.mxu0
      %v408 = vadd.f32 %v303, %v407
      %409 = vmatmul.bf16.gmra.mxu0 %v368
      %v410 = vpop.f32.mrf.mxu0
      %v411 = vadd.f32 %v303, %v410
      %v412 = vpop.f32.mrf.mxu0
      %v413 = vadd.f32 %v303, %v412
      %414 = vmatmul.bf16.gmra.mxu0 %v371
      %v415 = vpop.f32.mrf.mxu0
      %v416 = vadd.f32 %v303, %v415
      %v417 = vpop.f32.mrf.mxu0
      %v418 = vadd.f32 %v303, %v417
      %419 = vmatmul.bf16.gmra.mxu0 %v374
      %v420 = vpop.f32.mrf.mxu0
      %v421 = vadd.f32 %v303, %v420
      %v422 = vpop.f32.mrf.mxu0
      %v423 = vadd.f32 %v303, %v422
      %424 = vdwg.mxu0
      %v425 = vmul.f32 %v386, 0.5
      %v426 = vmul.f32 %v388, 0.5
      %v427 = vmul.f32 %v391, 0.5
      %v428 = vmul.f32 %v393, 0.5
      %v429 = vmul.f32 %v396, 0.5
      %v430 = vmul.f32 %v398, 0.5
      %v431 = vmul.f32 %v401, 0.5
      %v432 = vmul.f32 %v403, 0.5
      %v433 = vmul.f32 %v406, 0.5
      %v434 = vmul.f32 %v408, 0.5
      %v435 = vmul.f32 %v411, 0.5
      %v436 = vmul.f32 %v413, 0.5
      %v437 = vmul.f32 %v416, 0.5
      %v438 = vmul.f32 %v418, 0.5
      %v439 = vmul.f32 %v421, 0.5
      %v440 = vmul.f32 %v423, 0.5
      %v441 = vmax.f32 %v386, %v425
      %v442 = vmax.f32 %v388, %v426
      %v443 = vmax.f32 %v391, %v427
      %v444 = vmax.f32 %v393, %v428
      %v445 = vmax.f32 %v396, %v429
      %v446 = vmax.f32 %v398, %v430
      %v447 = vmax.f32 %v401, %v431
      %v448 = vmax.f32 %v403, %v432
      %v449 = vmax.f32 %v406, %v433
      %v450 = vmax.f32 %v408, %v434
      %v451 = vmax.f32 %v411, %v435
      %v452 = vmax.f32 %v413, %v436
      %v453 = vmax.f32 %v416, %v437
      %v454 = vmax.f32 %v418, %v438
      %v455 = vmax.f32 %v421, %v439
      %v456 = vmax.f32 %v423, %v440
      %v457 = vpack.c.bf16 %v442, %v441
      %v458 = vpack.c.bf16 %v444, %v443
      %v459 = vpack.c.bf16 %v446, %v445
      %v460 = vpack.c.bf16 %v448, %v447
      %v461 = vpack.c.bf16 %v450, %v449
      %v462 = vpack.c.bf16 %v452, %v451
      %v463 = vpack.c.bf16 %v454, %v453
      %v464 = vpack.c.bf16 %v456, %v455
      %v465 = vld [vmem:[%s3] sm:$0xf]
      %v466 = vld [vmem:[%s3 + $0x4] sm:$0xf]
      %v467 = vld [vmem:[%s3 + $0x8] sm:$0xf]
      %v468 = vld [vmem:[%s3 + $0xc] sm:$0xf]
      %v469 = vld [vmem:[%s3 + $0x10] sm:$0xf]
      %v470 = vld [vmem:[%s3 + $0x14] sm:$0xf]
      %v471 = vld [vmem:[%s3 + $0x18] sm:$0xf]
      %v472 = vld [vmem:[%s3 + $0x1c] sm:$0xf]
      %v473 = vld [vmem:[%s3 + $0x20] sm:$0xf]
      %v474 = vld [vmem:[%s3 + $0x24] sm:$0xf]
      %v475 = vld [vmem:[%s3 + $0x28] sm:$0xf]
      %v476 = vld [vmem:[%s3 + $0x2c] sm:$0xf]
      %v477 = vld [vmem:[%s3 + $0x30] sm:$0xf]
      %v478 = vld [vmem:[%s3 + $0x34] sm:$0xf]
      %v479 = vld [vmem:[%s3 + $0x38] sm:$0xf]
      %v480 = vld [vmem:[%s3 + $0x3c] sm:$0xf]
      %v481 = vld [vmem:[%s4] sm:$0x1]
      %v483 = vperm.slane %v481, 0
      %v501 = vunpack.c.l.b16 %v465
      %v502 = vunpack.c.l.b16 %v466
      %v503 = vunpack.c.l.b16 %v467
      %v504 = vunpack.c.l.b16 %v468
      %v505 = vunpack.c.l.b16 %v469
      %v506 = vunpack.c.l.b16 %v470
      %v507 = vunpack.c.l.b16 %v471
      %v508 = vunpack.c.l.b16 %v472
      %v509 = vunpack.c.l.b16 %v473
      %v510 = vunpack.c.l.b16 %v474
      %v511 = vunpack.c.l.b16 %v475
      %v512 = vunpack.c.l.b16 %v476
      %v513 = vunpack.c.l.b16 %v477
      %v514 = vunpack.c.l.b16 %v478
      %v515 = vunpack.c.l.b16 %v479
      %v516 = vunpack.c.l.b16 %v480
      %v517 = vpack.c.b16 %v502, %v501
      %v518 = vpack.c.b16 %v504, %v503
      %v519 = vpack.c.b16 %v506, %v505
      %v520 = vpack.c.b16 %v508, %v507
      %v521 = vpack.c.b16 %v510, %v509
      %v522 = vpack.c.b16 %v512, %v511
      %v523 = vpack.c.b16 %v514, %v513
      %v524 = vpack.c.b16 %v516, %v515
      %533 = vmatpush.bf16.msra.mxu0 %v524
      %534 = vmatpush.bf16.msra.mxu0 %v523
      %535 = vmatpush.bf16.msra.mxu0 %v522
      %536 = vmatpush.bf16.msra.mxu0 %v521
      %537 = vmatpush.bf16.msra.mxu0 %v520
      %538 = vmatpush.bf16.msra.mxu0 %v519
      %539 = vmatpush.bf16.msra.mxu0 %v518
      %540 = vmatpush.bf16.msra.mxu0 %v517
      %541 = vmatmul.bf16.gmra.mxu0 %v457
      %v542 = vpop.f32.mrf.mxu0
      %v543 = vadd.f32 %v483, %v542
      %v544 = vpop.f32.mrf.mxu0
      %v545 = vadd.f32 %v483, %v544
      %546 = vmatmul.bf16.gmra.mxu0 %v458
      %v547 = vpop.f32.mrf.mxu0
      %v548 = vadd.f32 %v483, %v547
      %v549 = vpop.f32.mrf.mxu0
      %v550 = vadd.f32 %v483, %v549
      %551 = vmatmul.bf16.gmra.mxu0 %v459
      %v552 = vpop.f32.mrf.mxu0
      %v553 = vadd.f32 %v483, %v552
      %v554 = vpop.f32.mrf.mxu0
      %v555 = vadd.f32 %v483, %v554
      %556 = vmatmul.bf16.gmra.mxu0 %v460
      %v557 = vpop.f32.mrf.mxu0
      %v558 = vadd.f32 %v483, %v557
      %v559 = vpop.f32.mrf.mxu0
      %v560 = vadd.f32 %v483, %v559
      %561 = vmatmul.bf16.gmra.mxu0 %v461
      %v562 = vpop.f32.mrf.mxu0
      %v563 = vadd.f32 %v483, %v562
      %v564 = vpop.f32.mrf.mxu0
      %v565 = vadd.f32 %v483, %v564
      %566 = vmatmul.bf16.gmra.mxu0 %v462
      %v567 = vpop.f32.mrf.mxu0
      %v568 = vadd.f32 %v483, %v567
      %v569 = vpop.f32.mrf.mxu0
      %v570 = vadd.f32 %v483, %v569
      %571 = vmatmul.bf16.gmra.mxu0 %v463
      %v572 = vpop.f32.mrf.mxu0
      %v573 = vadd.f32 %v483, %v572
      %v574 = vpop.f32.mrf.mxu0
      %v575 = vadd.f32 %v483, %v574
      %576 = vmatmul.bf16.gmra.mxu0 %v464
      %v577 = vpop.f32.mrf.mxu0
      %v578 = vadd.f32 %v483, %v577
      %v579 = vpop.f32.mrf.mxu0
      %v580 = vadd.f32 %v483, %v579
      %581 = vdwg.mxu0
      %v582 = vmul.f32 %v543, 0.5
      %v583 = vmul.f32 %v545, 0.5
      %v584 = vmul.f32 %v548, 0.5
      %v585 = vmul.f32 %v550, 0.5
      %v586 = vmul.f32 %v553, 0.5
      %v587 = vmul.f32 %v555, 0.5
      %v588 = vmul.f32 %v558, 0.5
      %v589 = vmul.f32 %v560, 0.5
      %v590 = vmul.f32 %v563, 0.5
      %v591 = vmul.f32 %v565, 0.5
      %v592 = vmul.f32 %v568, 0.5
      %v593 = vmul.f32 %v570, 0.5
      %v594 = vmul.f32 %v573, 0.5
      %v595 = vmul.f32 %v575, 0.5
      %v596 = vmul.f32 %v578, 0.5
      %v597 = vmul.f32 %v580, 0.5
      %v598 = vmax.f32 %v543, %v582
      %v599 = vmax.f32 %v545, %v583
      %v600 = vmax.f32 %v548, %v584
      %v601 = vmax.f32 %v550, %v585
      %v602 = vmax.f32 %v553, %v586
      %v603 = vmax.f32 %v555, %v587
      %v604 = vmax.f32 %v558, %v588
      %v605 = vmax.f32 %v560, %v589
      %v606 = vmax.f32 %v563, %v590
      %v607 = vmax.f32 %v565, %v591
      %v608 = vmax.f32 %v568, %v592
      %v609 = vmax.f32 %v570, %v593
      %v610 = vmax.f32 %v573, %v594
      %v611 = vmax.f32 %v575, %v595
      %v612 = vmax.f32 %v578, %v596
      %v613 = vmax.f32 %v580, %v597
      %v614 = vpack.c.bf16 %v599, %v598
      %v615 = vpack.c.bf16 %v601, %v600
      %v616 = vpack.c.bf16 %v603, %v602
      %v617 = vpack.c.bf16 %v605, %v604
      %v618 = vpack.c.bf16 %v607, %v606
      %v619 = vpack.c.bf16 %v609, %v608
      %v620 = vpack.c.bf16 %v611, %v610
      %v621 = vpack.c.bf16 %v613, %v612
      %v622 = vld [vmem:[%s5] sm:$0xf]
      %v623 = vld [vmem:[%s5 + $0x4] sm:$0xf]
      %v624 = vld [vmem:[%s5 + $0x8] sm:$0xf]
      %v625 = vld [vmem:[%s5 + $0xc] sm:$0xf]
      %v626 = vld [vmem:[%s5 + $0x10] sm:$0xf]
      %v627 = vld [vmem:[%s5 + $0x14] sm:$0xf]
      %v628 = vld [vmem:[%s5 + $0x18] sm:$0xf]
      %v629 = vld [vmem:[%s5 + $0x1c] sm:$0xf]
      %v630 = vld [vmem:[%s5 + $0x20] sm:$0xf]
      %v631 = vld [vmem:[%s5 + $0x24] sm:$0xf]
      %v632 = vld [vmem:[%s5 + $0x28] sm:$0xf]
      %v633 = vld [vmem:[%s5 + $0x2c] sm:$0xf]
      %v634 = vld [vmem:[%s5 + $0x30] sm:$0xf]
      %v635 = vld [vmem:[%s5 + $0x34] sm:$0xf]
      %v636 = vld [vmem:[%s5 + $0x38] sm:$0xf]
      %v637 = vld [vmem:[%s5 + $0x3c] sm:$0xf]
      %v638 = vld [vmem:[%s6] sm:$0x1]
      %v640 = vperm.slane %v638, 0
      %v658 = vunpack.c.l.b16 %v622
      %v659 = vunpack.c.l.b16 %v623
      %v660 = vunpack.c.l.b16 %v624
      %v661 = vunpack.c.l.b16 %v625
      %v662 = vunpack.c.l.b16 %v626
      %v663 = vunpack.c.l.b16 %v627
      %v664 = vunpack.c.l.b16 %v628
      %v665 = vunpack.c.l.b16 %v629
      %v666 = vunpack.c.l.b16 %v630
      %v667 = vunpack.c.l.b16 %v631
      %v668 = vunpack.c.l.b16 %v632
      %v669 = vunpack.c.l.b16 %v633
      %v670 = vunpack.c.l.b16 %v634
      %v671 = vunpack.c.l.b16 %v635
      %v672 = vunpack.c.l.b16 %v636
      %v673 = vunpack.c.l.b16 %v637
      %v674 = vpack.c.b16 %v659, %v658
      %v675 = vpack.c.b16 %v661, %v660
      %v676 = vpack.c.b16 %v663, %v662
      %v677 = vpack.c.b16 %v665, %v664
      %v678 = vpack.c.b16 %v667, %v666
      %v679 = vpack.c.b16 %v669, %v668
      %v680 = vpack.c.b16 %v671, %v670
      %v681 = vpack.c.b16 %v673, %v672
      %690 = vmatpush.bf16.msra.mxu0 %v681
      %691 = vmatpush.bf16.msra.mxu0 %v680
      %692 = vmatpush.bf16.msra.mxu0 %v679
      %693 = vmatpush.bf16.msra.mxu0 %v678
      %694 = vmatpush.bf16.msra.mxu0 %v677
      %695 = vmatpush.bf16.msra.mxu0 %v676
      %696 = vmatpush.bf16.msra.mxu0 %v675
      %697 = vmatpush.bf16.msra.mxu0 %v674
      %698 = vmatmul.bf16.gmra.mxu0 %v614
      %v699 = vpop.f32.mrf.mxu0
      %v700 = vadd.f32 %v640, %v699
      %v701 = vpop.f32.mrf.mxu0
      %v702 = vadd.f32 %v640, %v701
      %703 = vmatmul.bf16.gmra.mxu0 %v615
      %v704 = vpop.f32.mrf.mxu0
      %v705 = vadd.f32 %v640, %v704
      %v706 = vpop.f32.mrf.mxu0
      %v707 = vadd.f32 %v640, %v706
      %708 = vmatmul.bf16.gmra.mxu0 %v616
      %v709 = vpop.f32.mrf.mxu0
      %v710 = vadd.f32 %v640, %v709
      %v711 = vpop.f32.mrf.mxu0
      %v712 = vadd.f32 %v640, %v711
      %713 = vmatmul.bf16.gmra.mxu0 %v617
      %v714 = vpop.f32.mrf.mxu0
      %v715 = vadd.f32 %v640, %v714
      %v716 = vpop.f32.mrf.mxu0
      %v717 = vadd.f32 %v640, %v716
      %718 = vmatmul.bf16.gmra.mxu0 %v618
      %v719 = vpop.f32.mrf.mxu0
      %v720 = vadd.f32 %v640, %v719
      %v721 = vpop.f32.mrf.mxu0
      %v722 = vadd.f32 %v640, %v721
      %723 = vmatmul.bf16.gmra.mxu0 %v619
      %v724 = vpop.f32.mrf.mxu0
      %v725 = vadd.f32 %v640, %v724
      %v726 = vpop.f32.mrf.mxu0
      %v727 = vadd.f32 %v640, %v726
      %728 = vmatmul.bf16.gmra.mxu0 %v620
      %v729 = vpop.f32.mrf.mxu0
      %v730 = vadd.f32 %v640, %v729
      %v731 = vpop.f32.mrf.mxu0
      %v732 = vadd.f32 %v640, %v731
      %733 = vmatmul.bf16.gmra.mxu0 %v621
      %v734 = vpop.f32.mrf.mxu0
      %v735 = vadd.f32 %v640, %v734
      %v736 = vpop.f32.mrf.mxu0
      %v737 = vadd.f32 %v640, %v736
      %738 = vdwg.mxu0
      %739 = vmax.xlane.f32.xlu0 %v700
      %v740 = vpop.xlane.xlu0 %739
      %741 = vmax.xlane.f32.xlu0 %v702
      %v742 = vpop.xlane.xlu0 %741
      %743 = vmax.xlane.f32.xlu0 %v705
      %v744 = vpop.xlane.xlu0 %743
      %745 = vmax.xlane.f32.xlu0 %v707
      %v746 = vpop.xlane.xlu0 %745
      %747 = vmax.xlane.f32.xlu0 %v710
      %v748 = vpop.xlane.xlu0 %747
      %749 = vmax.xlane.f32.xlu0 %v712
      %v750 = vpop.xlane.xlu0 %749
      %751 = vmax.xlane.f32.xlu0 %v715
      %v752 = vpop.xlane.xlu0 %751
      %753 = vmax.xlane.f32.xlu0 %v717
      %v754 = vpop.xlane.xlu0 %753
      %755 = vmax.xlane.f32.xlu0 %v720
      %v756 = vpop.xlane.xlu0 %755
      %757 = vmax.xlane.f32.xlu0 %v722
      %v758 = vpop.xlane.xlu0 %757
      %759 = vmax.xlane.f32.xlu0 %v725
      %v760 = vpop.xlane.xlu0 %759
      %761 = vmax.xlane.f32.xlu0 %v727
      %v762 = vpop.xlane.xlu0 %761
      %763 = vmax.xlane.f32.xlu0 %v730
      %v764 = vpop.xlane.xlu0 %763
      %765 = vmax.xlane.f32.xlu0 %v732
      %v766 = vpop.xlane.xlu0 %765
      %767 = vmax.xlane.f32.xlu0 %v735
      %v768 = vpop.xlane.xlu0 %767
      %769 = vmax.xlane.f32.xlu0 %v737
      %v770 = vpop.xlane.xlu0 %769
      %v771 = vsub.f32 %v700, %v740
      %v772 = vsub.f32 %v702, %v742
      %v773 = vsub.f32 %v705, %v744
      %v774 = vsub.f32 %v707, %v746
      %v775 = vsub.f32 %v710, %v748
      %v776 = vsub.f32 %v712, %v750
      %v777 = vsub.f32 %v715, %v752
      %v778 = vsub.f32 %v717, %v754
      %v779 = vsub.f32 %v720, %v756
      %v780 = vsub.f32 %v722, %v758
      %v781 = vsub.f32 %v725, %v760
      %v782 = vsub.f32 %v727, %v762
      %v783 = vsub.f32 %v730, %v764
      %v784 = vsub.f32 %v732, %v766
      %v785 = vsub.f32 %v735, %v768
      %v786 = vsub.f32 %v737, %v770
      %v787 = vmul.f32 %v771, 1.442695
      %v788 = vpow.pop %v787
      %v789 = vmul.f32 %v772, 1.442695
      %v790 = vpow.pop %v789
      %v791 = vmul.f32 %v773, 1.442695
      %v792 = vpow.pop %v791
      %v793 = vmul.f32 %v774, 1.442695
      %v794 = vpow.pop %v793
      %v795 = vmul.f32 %v775, 1.442695
      %v796 = vpow.pop %v795
      %v797 = vmul.f32 %v776, 1.442695
      %v798 = vpow.pop %v797
      %v799 = vmul.f32 %v777, 1.442695
      %v800 = vpow.pop %v799
      %v801 = vmul.f32 %v778, 1.442695
      %v802 = vpow.pop %v801
      %v803 = vmul.f32 %v779, 1.442695
      %v804 = vpow.pop %v803
      %v805 = vmul.f32 %v780, 1.442695
      %v806 = vpow.pop %v805
      %v807 = vmul.f32 %v781, 1.442695
      %v808 = vpow.pop %v807
      %v809 = vmul.f32 %v782, 1.442695
      %v810 = vpow.pop %v809
      %v811 = vmul.f32 %v783, 1.442695
      %v812 = vpow.pop %v811
      %v813 = vmul.f32 %v784, 1.442695
      %v814 = vpow.pop %v813
      %v815 = vmul.f32 %v785, 1.442695
      %v816 = vpow.pop %v815
      %v817 = vmul.f32 %v786, 1.442695
      %v818 = vpow.pop %v817
      %819 = vadd.xlane.f32.xlu0 %v788
      %v820 = vpop.xlane.xlu0 %819
      %821 = vadd.xlane.f32.xlu0 %v790
      %v822 = vpop.xlane.xlu0 %821
      %823 = vadd.xlane.f32.xlu0 %v792
      %v824 = vpop.xlane.xlu0 %823
      %825 = vadd.xlane.f32.xlu0 %v794
      %v826 = vpop.xlane.xlu0 %825
      %827 = vadd.xlane.f32.xlu0 %v796
      %v828 = vpop.xlane.xlu0 %827
      %829 = vadd.xlane.f32.xlu0 %v798
      %v830 = vpop.xlane.xlu0 %829
      %831 = vadd.xlane.f32.xlu0 %v800
      %v832 = vpop.xlane.xlu0 %831
      %833 = vadd.xlane.f32.xlu0 %v802
      %v834 = vpop.xlane.xlu0 %833
      %835 = vadd.xlane.f32.xlu0 %v804
      %v836 = vpop.xlane.xlu0 %835
      %837 = vadd.xlane.f32.xlu0 %v806
      %v838 = vpop.xlane.xlu0 %837
      %839 = vadd.xlane.f32.xlu0 %v808
      %v840 = vpop.xlane.xlu0 %839
      %841 = vadd.xlane.f32.xlu0 %v810
      %v842 = vpop.xlane.xlu0 %841
      %843 = vadd.xlane.f32.xlu0 %v812
      %v844 = vpop.xlane.xlu0 %843
      %845 = vadd.xlane.f32.xlu0 %v814
      %v846 = vpop.xlane.xlu0 %845
      %847 = vadd.xlane.f32.xlu0 %v816
      %v848 = vpop.xlane.xlu0 %847
      %849 = vadd.xlane.f32.xlu0 %v818
      %v850 = vpop.xlane.xlu0 %849
      %v851 = vrcp.pop %v820
      %v852 = vrcp.pop %v822
      %v853 = vrcp.pop %v824
      %v854 = vrcp.pop %v826
      %v855 = vrcp.pop %v828
      %v856 = vrcp.pop %v830
      %v857 = vrcp.pop %v832
      %v858 = vrcp.pop %v834
      %v859 = vrcp.pop %v836
      %v860 = vrcp.pop %v838
      %v861 = vrcp.pop %v840
      %v862 = vrcp.pop %v842
      %v863 = vrcp.pop %v844
      %v864 = vrcp.pop %v846
      %v865 = vrcp.pop %v848
      %v866 = vrcp.pop %v850
      %v867 = vmul.f32 %v788, %v851
      %v868 = vmul.f32 %v790, %v852
      %v869 = vmul.f32 %v792, %v853
      %v870 = vmul.f32 %v794, %v854
      %v871 = vmul.f32 %v796, %v855
      %v872 = vmul.f32 %v798, %v856
      %v873 = vmul.f32 %v800, %v857
      %v874 = vmul.f32 %v802, %v858
      %v875 = vmul.f32 %v804, %v859
      %v876 = vmul.f32 %v806, %v860
      %v877 = vmul.f32 %v808, %v861
      %v878 = vmul.f32 %v810, %v862
      %v879 = vmul.f32 %v812, %v863
      %v880 = vmul.f32 %v814, %v864
      %v881 = vmul.f32 %v816, %v865
      %v882 = vmul.f32 %v818, %v866
      %v883 = vpack.c.bf16 %v867, %v867
      %v884 = vpack.c.bf16 %v868, %v868
      %v885 = vpack.c.bf16 %v869, %v869
      %v886 = vpack.c.bf16 %v870, %v870
      %v887 = vpack.c.bf16 %v871, %v871
      %v888 = vpack.c.bf16 %v872, %v872
      %v889 = vpack.c.bf16 %v873, %v873
      %v890 = vpack.c.bf16 %v874, %v874
      %v891 = vpack.c.bf16 %v875, %v875
      %v892 = vpack.c.bf16 %v876, %v876
      %v893 = vpack.c.bf16 %v877, %v877
      %v894 = vpack.c.bf16 %v878, %v878
      %v895 = vpack.c.bf16 %v879, %v879
      %v896 = vpack.c.bf16 %v880, %v880
      %v897 = vpack.c.bf16 %v881, %v881
      %v898 = vpack.c.bf16 %v882, %v882
      %899 = vst [vmem:[%s280] sm:$0xf] %v883
      %900 = vst [vmem:[%s280 + $0x4] sm:$0xf] %v884
      %901 = vst [vmem:[%s280 + $0x8] sm:$0xf] %v885
      %902 = vst [vmem:[%s280 + $0xc] sm:$0xf] %v886
      %903 = vst [vmem:[%s280 + $0x10] sm:$0xf] %v887
      %904 = vst [vmem:[%s280 + $0x14] sm:$0xf] %v888
      %905 = vst [vmem:[%s280 + $0x18] sm:$0xf] %v889
      %906 = vst [vmem:[%s280 + $0x1c] sm:$0xf] %v890
      %907 = vst [vmem:[%s280 + $0x20] sm:$0xf] %v891
      %908 = vst [vmem:[%s280 + $0x24] sm:$0xf] %v892
      %909 = vst [vmem:[%s280 + $0x28] sm:$0xf] %v893
      %910 = vst [vmem:[%s280 + $0x2c] sm:$0xf] %v894
      %911 = vst [vmem:[%s280 + $0x30] sm:$0xf] %v895
      %912 = vst [vmem:[%s280 + $0x34] sm:$0xf] %v896
      %913 = vst [vmem:[%s280 + $0x38] sm:$0xf] %v897
      %914 = vst [vmem:[%s280 + $0x3c] sm:$0xf] %v898
      %s915 = smul.u32 16, %s18
      %p916 = scmp.lt.s32.totalorder %s915, 31
      %s917 = scalar_select %p916, %s915, 31
      %s918 = smul.addr %s917, 4
      %s919 = scalar_lea.vmem %s7, %s918
      // Predicated region
      $region49: #{disco_forward.1} parent=47 // pred_check
        %p920 = pneg %p188
      $region50: #{disco_forward.1} parent=47 // pred_check_branch
        %922 = sbr.rel (%p920) target = $region52
      $region51: #{disco_forward.1} parent=47 // pred_region
        %s923 = smul.u32 16, %s18
      $region52: #{disco_forward.1} parent=47 // pred_fallthru
        _
    $region48: #{disco_forward.1} parent=5 // pred_fallthru
      _
    %p924 = scmp.le.s32.totalorder 2, %s13
    // Predicated region
    $region53: #{disco_forward.1} parent=5 // pred_check
      %p925 = pneg %p924
    $region54: #{disco_forward.1} parent=5 // pred_check_branch
      %927 = sbr.rel (%p925) target = $region56
    $region55: #{disco_forward.1} parent=5 // pred_region
      %s928 = ssub.s32 %s13, 2
      // Predicated region
      $region57: #{disco_forward.1} parent=55 // pred_check
        %p929 = pneg %p194
      $region58: #{disco_forward.1} parent=55 // pred_check_branch
        %931 = sbr.rel (%p929) target = $region60
      $region59: #{disco_forward.1} parent=55 // pred_region
        %s932 = smul.u32 16, %s19
        %p933 = scmp.lt.s32.totalorder %s932, 31
        %s934 = scalar_select %p933, %s932, 31
        %s935 = smul.addr %s934, 4
        %s936 = scalar_lea.vmem %s7, %s935
      $region60: #{disco_forward.1} parent=55 // pred_fallthru
        _
    $region56: #{disco_forward.1} parent=5 // pred_fallthru
      _
  $region6: #{disco_forward.1} parent=0 // loop_footer
    %s17 = sadd.s32 1, %s13
  $region7: #{disco_forward.1} parent=0 // loop_footer_branch
    %12 = sbr.rel target = $region3
  $region8: #{disco_forward.1} parent=0 // loop_exit
    _

</llo_original>
